<compile_context>
chip_gen: v5e
topology: v5e:2x2
jax: 0.10.0
libtpu: 0.0.40
codegen_flags: <defaults>
</compile_context>

<pallas_src>
import jax
import jax.numpy as jnp
from jax.experimental import pallas as pl
from jax.experimental.pallas import tpu as pltpu

HIDDEN = 256


def _round_up(x, m):
    return (x + m - 1) // m * m


def _ppo_forward_kernel(obs_ref, w1_ref, b1_ref, w2_ref, b2_ref,
                        wh_ref, bh_ref, out_ref):
    # obs tile [Bt, obs_dim] f32; weights bf16 (VMEM-resident across grid);
    # biases f32; output f32 [Bt, act_dim + 1].
    x = obs_ref[...].astype(jnp.bfloat16)
    h1 = jnp.dot(x, w1_ref[...], preferred_element_type=jnp.float32)
    h1 = jnp.maximum(h1 + b1_ref[...], 0.0).astype(jnp.bfloat16)   # ReLU, f32 epilogue
    h2 = jnp.dot(h1, w2_ref[...], preferred_element_type=jnp.float32)
    h2 = jnp.maximum(h2 + b2_ref[...], 0.0).astype(jnp.bfloat16)   # ReLU, f32 epilogue
    heads = jnp.dot(h2, wh_ref[...], preferred_element_type=jnp.float32)
    out_ref[...] = heads + bh_ref[...]                             # [Bt, act_dim+1] f32


def prepare_params(params):
    """One-time packing: bf16 weights, fused policy+value head. Call once,
    reuse across forward calls (keeps packing off the per-call path)."""
    return dict(
        w1=params["w1"].astype(jnp.bfloat16),           # [obs_dim, 256]
        b1=params["b1"].astype(jnp.float32),             # [1, 256]
        w2=params["w2"].astype(jnp.bfloat16),            # [256, 256]
        b2=params["b2"].astype(jnp.float32),             # [1, 256]
        wh=jnp.concatenate([params["wp"], params["wv"]], axis=1).astype(jnp.bfloat16),
        bh=jnp.concatenate([params["bp"], params["bv"]], axis=1).astype(jnp.float32),
    )


@jax.jit
def ppo_actor_critic_forward(obs, prep):
    """Pallas implementation of PPOActorCritic.forward.

    obs:  [B, obs_dim] float32
    prep: output of prepare_params()
    returns (logits [B, act_dim] f32, value [B] f32)
    """
    B, obs_dim = obs.shape
    n_heads = prep["wh"].shape[1]        # act_dim + 1 (fused policy + value)
    act_dim = n_heads - 1

    # Tile sizing: cap at 1024 rows (well within v5e's 16 MiB scoped default;
    # total footprint here is ~4 MB), but always aim for >= 2 tiles so the
    # "parallel" batch axis can shard across v7x's two TensorCores.
    b_tile = min(1024, _round_up(pl.cdiv(B, 2), 8))
    grid = (pl.cdiv(B, b_tile),)

    flops = 2 * B * (obs_dim * HIDDEN + HIDDEN * HIDDEN + HIDDEN * n_heads)
    bytes_accessed = (
        B * obs_dim * 4                                   # obs read (f32)
        + (obs_dim * HIDDEN + HIDDEN * HIDDEN + HIDDEN * n_heads) * 2  # bf16 weights
        + (2 * HIDDEN + n_heads) * 4                      # biases
        + B * n_heads * 4                                 # output write (f32)
    )

    out = pl.pallas_call(
        _ppo_forward_kernel,
        out_shape=jax.ShapeDtypeStruct((B, n_heads), jnp.float32),
        grid=grid,
        in_specs=[
            pl.BlockSpec((b_tile, obs_dim), lambda i: (i, 0)),    # obs tile (full K)
            pl.BlockSpec((obs_dim, HIDDEN), lambda i: (0, 0)),    # w1 (resident)
            pl.BlockSpec((1, HIDDEN), lambda i: (0, 0)),          # b1
            pl.BlockSpec((HIDDEN, HIDDEN), lambda i: (0, 0)),     # w2
            pl.BlockSpec((1, HIDDEN), lambda i: (0, 0)),          # b2
            pl.BlockSpec((HIDDEN, n_heads), lambda i: (0, 0)),    # fused heads W
            pl.BlockSpec((1, n_heads), lambda i: (0, 0)),         # fused heads b
        ],
        out_specs=pl.BlockSpec((b_tile, n_heads), lambda i: (i, 0)),
        compiler_params=pltpu.CompilerParams(
            dimension_semantics=("parallel",),
            vmem_limit_bytes=32 * 1024 * 1024,
        ),
        cost_estimate=pl.CostEstimate(
            flops=flops, transcendentals=0, bytes_accessed=bytes_accessed),
    )(obs, prep["w1"], prep["b1"], prep["w2"], prep["b2"], prep["wh"], prep["bh"])

    logits = out[:, :act_dim]
    value = out[:, act_dim]                 # torch: value_head(x).squeeze(-1)
    return logits, value


def init_params(key, obs_dim, act_dim, hidden=HIDDEN):
    """Deterministic init mimicking nn.Linear's U(-1/sqrt(fan_in), 1/sqrt(fan_in))."""
    keys = jax.random.split(key, 8)

    def linear(kw, kb, fan_in, fan_out):
        bound = 1.0 / jnp.sqrt(jnp.float32(fan_in))
        w = jax.random.uniform(kw, (fan_in, fan_out), jnp.float32, -bound, bound)
        b = jax.random.uniform(kb, (1, fan_out), jnp.float32, -bound, bound)
        return w, b

    w1, b1 = linear(keys[0], keys[1], obs_dim, hidden)
    w2, b2 = linear(keys[2], keys[3], hidden, hidden)
    wp, bp = linear(keys[4], keys[5], hidden, act_dim)
    wv, bv = linear(keys[6], keys[7], hidden, 1)
    return dict(w1=w1, b1=b1, w2=w2, b2=b2, wp=wp, bp=bp, wv=wv, bv=bv)


def reference_forward(obs, params):
    """Pure-JAX reference doing the same bf16-weight / f32-accumulate math."""
    def dot32(a, b):
        return jnp.dot(a, b, preferred_element_type=jnp.float32)
    x = obs.astype(jnp.bfloat16)
    h1 = jnp.maximum(dot32(x, params["w1"].astype(jnp.bfloat16)) + params["b1"], 0.0)
    h1 = h1.astype(jnp.bfloat16)
    h2 = jnp.maximum(dot32(h1, params["w2"].astype(jnp.bfloat16)) + params["b2"], 0.0)
    h2 = h2.astype(jnp.bfloat16)
    logits = dot32(h2, params["wp"].astype(jnp.bfloat16)) + params["bp"]
    value = (dot32(h2, params["wv"].astype(jnp.bfloat16)) + params["bv"])[:, 0]
    return logits, value


if __name__ == "__main__":
    key = jax.random.PRNGKey(0)
    k_obs, k_params, k_obs2 = jax.random.split(key, 3)

    B, obs_dim, act_dim = 8, 32, 8
    obs = jax.random.normal(k_obs, (B, obs_dim), dtype=jnp.float32)
    params = init_params(k_params, obs_dim, act_dim)
    prep = prepare_params(params)

    logits, value = ppo_actor_critic_forward(obs, prep)
    jax.block_until_ready((logits, value))

    ref_logits, ref_value = reference_forward(obs, params)
    assert logits.shape == (B, act_dim)
    assert value.shape == (B,)
    assert jnp.allclose(logits, ref_logits, atol=1e-3, rtol=1e-3)
    assert jnp.allclose(value, ref_value, atol=1e-3, rtol=1e-3)

    # Second check: batch not divisible by the tile; exercises the multi-tile
    # grid with a masked (partial) final block and no wrapper-side padding.
    B2 = 1050
    obs2 = jax.random.normal(k_obs2, (B2, obs_dim), dtype=jnp.float32)
    logits2, value2 = ppo_actor_critic_forward(obs2, prep)
    jax.block_until_ready((logits2, value2))
    ref_logits2, ref_value2 = reference_forward(obs2, params)
    assert logits2.shape == (B2, act_dim)
    assert value2.shape == (B2,)
    assert jnp.allclose(logits2, ref_logits2, atol=1e-3, rtol=1e-3)
    assert jnp.allclose(value2, ref_value2, atol=1e-3, rtol=1e-3)

    # TODO(synk): `act()` (Categorical sampling / log_prob) is outside forward();
    # implement as a separate kernel or plain JAX if needed.
    print("KERNEL_OK")
</pallas_src>

<mosaic_0001>
module attributes {stable_mosaic.version = 11 : i64} {
  func.func @_ppo_forward_kernel(%arg0: i32, %arg1: memref<8x32xf32, #tpu.memory_space<vmem>>, %arg2: memref<32x256xbf16, #tpu.memory_space<vmem>>, %arg3: memref<1x256xf32, #tpu.memory_space<vmem>>, %arg4: memref<256x256xbf16, #tpu.memory_space<vmem>>, %arg5: memref<1x256xf32, #tpu.memory_space<vmem>>, %arg6: memref<256x9xbf16, #tpu.memory_space<vmem>>, %arg7: memref<1x9xf32, #tpu.memory_space<vmem>>, %arg8: memref<8x9xf32, #tpu.memory_space<vmem>>) attributes {dimension_semantics = [#tpu.dimension_semantics<parallel>], iteration_bounds = array<i64: 1>, scalar_prefetch = 0 : i64, scratch_operands = 0 : i64, tpu.core_type = #tpu.core_type<tc>, window_params = [{transform_indices = @transform_0, window_bounds = array<i64: 8, 32>}, {pipeline_mode = #tpu.pipeline_mode<synchronous>, transform_indices = @transform_1, window_bounds = array<i64: 32, 256>}, {pipeline_mode = #tpu.pipeline_mode<synchronous>, transform_indices = @transform_2, window_bounds = array<i64: 1, 256>}, {pipeline_mode = #tpu.pipeline_mode<synchronous>, transform_indices = @transform_3, window_bounds = array<i64: 256, 256>}, {pipeline_mode = #tpu.pipeline_mode<synchronous>, transform_indices = @transform_4, window_bounds = array<i64: 1, 256>}, {pipeline_mode = #tpu.pipeline_mode<synchronous>, transform_indices = @transform_5, window_bounds = array<i64: 256, 9>}, {pipeline_mode = #tpu.pipeline_mode<synchronous>, transform_indices = @transform_6, window_bounds = array<i64: 1, 9>}, {transform_indices = @transform_7, window_bounds = array<i64: 8, 9>}]} {
    %c0 = arith.constant 0 : index
    %c0_0 = arith.constant 0 : index
    %0 = vector.load %arg1[%c0, %c0_0] : memref<8x32xf32, #tpu.memory_space<vmem>>, vector<8x32xf32>
    %1 = arith.truncf %0 : vector<8x32xf32> to vector<8x32xbf16>
    %c0_1 = arith.constant 0 : index
    %c0_2 = arith.constant 0 : index
    %2 = vector.load %arg2[%c0_1, %c0_2] : memref<32x256xbf16, #tpu.memory_space<vmem>>, vector<32x256xbf16>
    %cst = arith.constant dense<0.000000e+00> : vector<8x256xf32>
    %3 = tpu.matmul %1, %2, %cst {dimension_numbers = #tpu.dot_dimension_numbers<[1], [0], [0], [1], [0, 0, 1, 1], [], []>} : vector<8x32xbf16>, vector<32x256xbf16>, vector<8x256xf32> -> vector<8x256xf32>
    %c0_3 = arith.constant 0 : index
    %c0_4 = arith.constant 0 : index
    %4 = vector.load %arg3[%c0_3, %c0_4] : memref<1x256xf32, #tpu.memory_space<vmem>>, vector<1x256xf32>
    %5 = vector.broadcast %4 : vector<1x256xf32> to vector<8x256xf32>
    %6 = arith.addf %3, %5 : vector<8x256xf32>
    %cst_5 = arith.constant 0.000000e+00 : f32
    %7 = vector.broadcast %cst_5 : f32 to vector<8x256xf32>
    %8 = arith.maximumf %6, %7 : vector<8x256xf32>
    %9 = arith.truncf %8 : vector<8x256xf32> to vector<8x256xbf16>
    %c0_6 = arith.constant 0 : index
    %c0_7 = arith.constant 0 : index
    %10 = vector.load %arg4[%c0_6, %c0_7] : memref<256x256xbf16, #tpu.memory_space<vmem>>, vector<256x256xbf16>
    %cst_8 = arith.constant dense<0.000000e+00> : vector<8x256xf32>
    %11 = tpu.matmul %9, %10, %cst_8 {dimension_numbers = #tpu.dot_dimension_numbers<[1], [0], [0], [1], [0, 0, 1, 1], [], []>} : vector<8x256xbf16>, vector<256x256xbf16>, vector<8x256xf32> -> vector<8x256xf32>
    %c0_9 = arith.constant 0 : index
    %c0_10 = arith.constant 0 : index
    %12 = vector.load %arg5[%c0_9, %c0_10] : memref<1x256xf32, #tpu.memory_space<vmem>>, vector<1x256xf32>
    %13 = vector.broadcast %12 : vector<1x256xf32> to vector<8x256xf32>
    %14 = arith.addf %11, %13 : vector<8x256xf32>
    %cst_11 = arith.constant 0.000000e+00 : f32
    %15 = vector.broadcast %cst_11 : f32 to vector<8x256xf32>
    %16 = arith.maximumf %14, %15 : vector<8x256xf32>
    %17 = arith.truncf %16 : vector<8x256xf32> to vector<8x256xbf16>
    %c0_12 = arith.constant 0 : index
    %c0_13 = arith.constant 0 : index
    %18 = vector.load %arg6[%c0_12, %c0_13] : memref<256x9xbf16, #tpu.memory_space<vmem>>, vector<256x9xbf16>
    %cst_14 = arith.constant dense<0.000000e+00> : vector<8x9xf32>
    %19 = tpu.matmul %17, %18, %cst_14 {dimension_numbers = #tpu.dot_dimension_numbers<[1], [0], [0], [1], [0, 0, 1, 1], [], []>} : vector<8x256xbf16>, vector<256x9xbf16>, vector<8x9xf32> -> vector<8x9xf32>
    %c0_15 = arith.constant 0 : index
    %c0_16 = arith.constant 0 : index
    %20 = vector.load %arg7[%c0_15, %c0_16] : memref<1x9xf32, #tpu.memory_space<vmem>>, vector<1x9xf32>
    %21 = vector.broadcast %20 : vector<1x9xf32> to vector<8x9xf32>
    %22 = arith.addf %19, %21 : vector<8x9xf32>
    %c0_17 = arith.constant 0 : index
    %c0_18 = arith.constant 0 : index
    %23 = vector.load %arg8[%c0_17, %c0_18] : memref<8x9xf32, #tpu.memory_space<vmem>>, vector<8x9xf32>
    tpu.vector_store %arg8[%c0_17, %c0_18], %22 {strides = array<i32>} : memref<8x9xf32, #tpu.memory_space<vmem>>, vector<8x9xf32>,
    return
  }
  func.func @transform_0(%arg0: i32) -> (i32, i32) {
    %c0_i32 = arith.constant 0 : i32
    %c0_i32_0 = arith.constant 0 : i32
    return %arg0, %c0_i32 : i32, i32
  }
  func.func @transform_1(%arg0: i32) -> (i32, i32) {
    %c0_i32 = arith.constant 0 : i32
    %c0_i32_0 = arith.constant 0 : i32
    %c0_i32_1 = arith.constant 0 : i32
    return %c0_i32, %c0_i32_0 : i32, i32
  }
  func.func @transform_2(%arg0: i32) -> (i32, i32) {
    %c0_i32 = arith.constant 0 : i32
    %c0_i32_0 = arith.constant 0 : i32
    %c0_i32_1 = arith.constant 0 : i32
    return %c0_i32, %c0_i32_0 : i32, i32
  }
  func.func @transform_3(%arg0: i32) -> (i32, i32) {
    %c0_i32 = arith.constant 0 : i32
    %c0_i32_0 = arith.constant 0 : i32
    %c0_i32_1 = arith.constant 0 : i32
    return %c0_i32, %c0_i32_0 : i32, i32
  }
  func.func @transform_4(%arg0: i32) -> (i32, i32) {
    %c0_i32 = arith.constant 0 : i32
    %c0_i32_0 = arith.constant 0 : i32
    %c0_i32_1 = arith.constant 0 : i32
    return %c0_i32, %c0_i32_0 : i32, i32
  }
  func.func @transform_5(%arg0: i32) -> (i32, i32) {
    %c0_i32 = arith.constant 0 : i32
    %c0_i32_0 = arith.constant 0 : i32
    %c0_i32_1 = arith.constant 0 : i32
    return %c0_i32, %c0_i32_0 : i32, i32
  }
  func.func @transform_6(%arg0: i32) -> (i32, i32) {
    %c0_i32 = arith.constant 0 : i32
    %c0_i32_0 = arith.constant 0 : i32
    %c0_i32_1 = arith.constant 0 : i32
    return %c0_i32, %c0_i32_0 : i32, i32
  }
  func.func @transform_7(%arg0: i32) -> (i32, i32) {
    %c0_i32 = arith.constant 0 : i32
    %c0_i32_0 = arith.constant 0 : i32
    return %arg0, %c0_i32 : i32, i32
  }
}

</mosaic_0001>

<llo_original>
// kernel: ppo_actor_critic_forward.1
$region0: #{ppo_actor_critic_forward.1}
  #allocation0 [shape = 'u32[]', space=smem, size = 0x4, offset = 0x4, fixed_abs, tag = 'smem constant byte address 0x4 - core index']
  #allocation1 [shape = 'u32[72,128]{1,0:T(1,128)}', space=vmem, size = 0x9000, scoped, tag = 'internal scratch']
  %s0 = inlined_call_operand.vmem [shape: f32[8,32], index: 0, kind: input, shape index: {}]
  %s1 = inlined_call_operand.vmem [shape: bf16[32,256], index: 1, kind: input, shape index: {}]
  %s2 = inlined_call_operand.vmem [shape: f32[1,256], index: 2, kind: input, shape index: {}]
  %s3 = inlined_call_operand.hbm [shape: bf16[256,256], index: 3, kind: input, shape index: {}]
  %s4 = inlined_call_operand.vmem [shape: f32[1,256], index: 4, kind: input, shape index: {}]
  %s5 = inlined_call_operand.vmem [shape: bf16[256,9], index: 5, kind: input, shape index: {}]
  %s6 = inlined_call_operand.vmem [shape: f32[1,9], index: 6, kind: input, shape index: {}]
  %s7 = inlined_call_operand.vmem [shape: f32[8,9], index: 7, kind: output, shape index: {}]
  %s8 = sld [smem:[#allocation0]]
  $region42: #{ppo_actor_critic_forward.1} parent=0
    _
  %s10 = ssub.s32 1, %s8
  %s11 = scalar_select 0, %s10, %s8
  $region1: #{ppo_actor_critic_forward.1} parent=0
    #allocation2 [shape = 'u8[131072]{0}', space=vmem, size = 0x20000, scoped, tag = 'input window, operand 3, single buffered']
    #allocation3 [shape = 's32[1]{0}', space=sflag, size = 0x4, scoped, tag = 'scoped memory for ppo_actor_critic_forward.1']
    %12 = vsyncpa [#allocation3], 0
    // Predicated region
    $region2: #{ppo_actor_critic_forward.1} parent=1 // pred_check
      _
    $region3: #{ppo_actor_critic_forward.1} parent=1 // pred_check_branch
      %14 = sbr.rel (0) target = $region5
    $region4: #{ppo_actor_critic_forward.1} parent=1 // pred_region
      _
    $region5: #{ppo_actor_critic_forward.1} parent=1 // pred_fallthru
      _
    // Predicated region
    $region6: #{ppo_actor_critic_forward.1} parent=1 // pred_check
      _
    $region7: #{ppo_actor_critic_forward.1} parent=1 // pred_check_branch
      %16 = sbr.rel (0) target = $region9
    $region8: #{ppo_actor_critic_forward.1} parent=1 // pred_region
      _
    $region9: #{ppo_actor_critic_forward.1} parent=1 // pred_fallthru
      _
    // Predicated region
    $region10: #{ppo_actor_critic_forward.1} parent=1 // pred_check
      _
    $region11: #{ppo_actor_critic_forward.1} parent=1 // pred_check_branch
      %18 = sbr.rel (0) target = $region13
    $region12: #{ppo_actor_critic_forward.1} parent=1 // pred_region
      _
    $region13: #{ppo_actor_critic_forward.1} parent=1 // pred_fallthru
      _
    // Predicated region
    $region14: #{ppo_actor_critic_forward.1} parent=1 // pred_check
      _
    $region15: #{ppo_actor_critic_forward.1} parent=1 // pred_check_branch
      %20 = sbr.rel (0) target = $region17
    $region16: #{ppo_actor_critic_forward.1} parent=1 // pred_region
      %22 = vsyncadd [#allocation3], 0
      %s23 = sshll.u32 %s3, 4
      %s24 = int_to_ptr.hbm [resolvable:$true] %s23
      %s25 = sshll.u32 [#allocation2], 4
      %s26 = int_to_ptr.vmem [resolvable:$true] %s25
      %31 = dma.hbm_to_vmem [thread:$0]  %s24, 4096, %s26, [#allocation3], 128, 128, 8
    $region17: #{ppo_actor_critic_forward.1} parent=1 // pred_fallthru
      _
    // Predicated region
    $region18: #{ppo_actor_critic_forward.1} parent=1 // pred_check
      _
    $region19: #{ppo_actor_critic_forward.1} parent=1 // pred_check_branch
      %33 = sbr.rel (0) target = $region21
    $region20: #{ppo_actor_critic_forward.1} parent=1 // pred_region
      _
    $region21: #{ppo_actor_critic_forward.1} parent=1 // pred_fallthru
      _
    // Predicated region
    $region22: #{ppo_actor_critic_forward.1} parent=1 // pred_check
      _
    $region23: #{ppo_actor_critic_forward.1} parent=1 // pred_check_branch
      %35 = sbr.rel (0) target = $region25
    $region24: #{ppo_actor_critic_forward.1} parent=1 // pred_region
      _
    $region25: #{ppo_actor_critic_forward.1} parent=1 // pred_fallthru
      _
    // Predicated region
    $region26: #{ppo_actor_critic_forward.1} parent=1 // pred_check
      _
    $region27: #{ppo_actor_critic_forward.1} parent=1 // pred_check_branch
      %37 = sbr.rel (0) target = $region29
    $region28: #{ppo_actor_critic_forward.1} parent=1 // pred_region
      _
    $region29: #{ppo_actor_critic_forward.1} parent=1 // pred_fallthru
      _
    // Predicated region
    $region30: #{ppo_actor_critic_forward.1} parent=1 // pred_check
      _
    $region31: #{ppo_actor_critic_forward.1} parent=1 // pred_check_branch
      %39 = sbr.rel (0) target = $region33
    $region32: #{ppo_actor_critic_forward.1} parent=1 // pred_region
      %41 = dma.done [#allocation3], 4096
    $region33: #{ppo_actor_critic_forward.1} parent=1 // pred_fallthru
      _
    %v43 = vld [vmem:[%s0] sm:$0xff]
    %v44 = vpack.c.bf16 %v43, %v43
    %v45 = vld [vmem:[%s1] sm:$0xff]
    %v46 = vld [vmem:[%s1 + $0x8] sm:$0xff]
    %v47 = vld [vmem:[%s1 + $0x10] sm:$0xff]
    %v48 = vld [vmem:[%s1 + $0x18] sm:$0xff]
    %v49 = vld [vmem:[%s2] sm:$0x3]
    %v51 = vperm.slane %v49, 0
    %v52 = vperm.slane %v49, 1
    %v59 = vunpack.c.l.b16 %v45
    %v60 = vunpack.c.h.b16 %v45
    %v61 = vunpack.c.l.b16 %v46
    %v62 = vunpack.c.h.b16 %v46
    %v63 = vunpack.c.l.b16 %v47
    %v64 = vunpack.c.h.b16 %v47
    %v65 = vunpack.c.l.b16 %v48
    %v66 = vunpack.c.h.b16 %v48
    %v67 = vpack.c.b16 %v61, %v59
    %v68 = vpack.c.b16 %v62, %v60
    %v69 = vpack.c.b16 %v65, %v63
    %v70 = vpack.c.b16 %v66, %v64
    %vm75 = vcmask 261120
    %v77 = vsel %vm75, %v44, 0
    %79 = vmatpush.bf16.msra.mxu0 0
    %80 = vmatpush.bf16.msra.mxu0 0
    %81 = vmatpush.bf16.msra.mxu0 0
    %82 = vmatpush.bf16.msra.mxu0 0
    %83 = vmatpush.bf16.msra.mxu0 0
    %84 = vmatpush.bf16.msra.mxu0 0
    %85 = vmatpush.bf16.msra.mxu0 %v69
    %86 = vmatpush.bf16.msra.mxu0 %v67
    %87 = vmatmul.bf16.gmra.mxu0 %v77
    %v88 = vpop.f32.mrf.mxu0
    %v89 = vadd.f32 %v51, %v88
    %v90 = vpop.f32.mrf.mxu0
    %91 = vdwg.mxu0
    %92 = vmatpush.bf16.msra.mxu0 0
    %93 = vmatpush.bf16.msra.mxu0 0
    %94 = vmatpush.bf16.msra.mxu0 0
    %95 = vmatpush.bf16.msra.mxu0 0
    %96 = vmatpush.bf16.msra.mxu0 0
    %97 = vmatpush.bf16.msra.mxu0 0
    %98 = vmatpush.bf16.msra.mxu0 %v70
    %99 = vmatpush.bf16.msra.mxu0 %v68
    %100 = vmatmul.bf16.gmra.mxu0 %v77
    %v101 = vpop.f32.mrf.mxu0
    %v102 = vadd.f32 %v52, %v101
    %v103 = vpop.f32.mrf.mxu0
    %104 = vdwg.mxu0
    %v105 = vmax.f32 %v89, 0.0
    %v106 = vmax.f32 %v102, 0.0
    %v107 = vpack.c.bf16 %v105, %v105
    %v108 = vpack.c.bf16 %v106, %v106
    %v109 = vld [vmem:[#allocation2] sm:$0xff]
    %v110 = vld [vmem:[#allocation2 + $0x8] sm:$0xff]
    %v111 = vld [vmem:[#allocation2 + $0x10] sm:$0xff]
    %v112 = vld [vmem:[#allocation2 + $0x18] sm:$0xff]
    %v113 = vld [vmem:[#allocation2 + $0x20] sm:$0xff]
    %v114 = vld [vmem:[#allocation2 + $0x28] sm:$0xff]
    %v115 = vld [vmem:[#allocation2 + $0x30] sm:$0xff]
    %v116 = vld [vmem:[#allocation2 + $0x38] sm:$0xff]
    %v117 = vld [vmem:[#allocation2 + $0x40] sm:$0xff]
    %v118 = vld [vmem:[#allocation2 + $0x48] sm:$0xff]
    %v119 = vld [vmem:[#allocation2 + $0x50] sm:$0xff]
    %v120 = vld [vmem:[#allocation2 + $0x58] sm:$0xff]
    %v121 = vld [vmem:[#allocation2 + $0x60] sm:$0xff]
    %v122 = vld [vmem:[#allocation2 + $0x68] sm:$0xff]
    %v123 = vld [vmem:[#allocation2 + $0x70] sm:$0xff]
    %v124 = vld [vmem:[#allocation2 + $0x78] sm:$0xff]
    %v125 = vld [vmem:[#allocation2 + $0x80] sm:$0xff]
    %v126 = vld [vmem:[#allocation2 + $0x88] sm:$0xff]
    %v127 = vld [vmem:[#allocation2 + $0x90] sm:$0xff]
    %v128 = vld [vmem:[#allocation2 + $0x98] sm:$0xff]
    %v129 = vld [vmem:[#allocation2 + $0xa0] sm:$0xff]
    %v130 = vld [vmem:[#allocation2 + $0xa8] sm:$0xff]
    %v131 = vld [vmem:[#allocation2 + $0xb0] sm:$0xff]
    %v132 = vld [vmem:[#allocation2 + $0xb8] sm:$0xff]
    %v133 = vld [vmem:[#allocation2 + $0xc0] sm:$0xff]
    %v134 = vld [vmem:[#allocation2 + $0xc8] sm:$0xff]
    %v135 = vld [vmem:[#allocation2 + $0xd0] sm:$0xff]
    %v136 = vld [vmem:[#allocation2 + $0xd8] sm:$0xff]
    %v137 = vld [vmem:[#allocation2 + $0xe0] sm:$0xff]
    %v138 = vld [vmem:[#allocation2 + $0xe8] sm:$0xff]
    %v139 = vld [vmem:[#allocation2 + $0xf0] sm:$0xff]
    %v140 = vld [vmem:[#allocation2 + $0xf8] sm:$0xff]
    %v141 = vld [vmem:[%s4] sm:$0x3]
    %v143 = vperm.slane %v141, 0
    %v144 = vperm.slane %v141, 1
    %v179 = vunpack.c.l.b16 %v109
    %v180 = vunpack.c.h.b16 %v109
    %v181 = vunpack.c.l.b16 %v110
    %v182 = vunpack.c.h.b16 %v110
    %v183 = vunpack.c.l.b16 %v111
    %v184 = vunpack.c.h.b16 %v111
    %v185 = vunpack.c.l.b16 %v112
    %v186 = vunpack.c.h.b16 %v112
    %v187 = vunpack.c.l.b16 %v113
    %v188 = vunpack.c.h.b16 %v113
    %v189 = vunpack.c.l.b16 %v114
    %v190 = vunpack.c.h.b16 %v114
    %v191 = vunpack.c.l.b16 %v115
    %v192 = vunpack.c.h.b16 %v115
    %v193 = vunpack.c.l.b16 %v116
    %v194 = vunpack.c.h.b16 %v116
    %v195 = vunpack.c.l.b16 %v117
    %v196 = vunpack.c.h.b16 %v117
    %v197 = vunpack.c.l.b16 %v118
    %v198 = vunpack.c.h.b16 %v118
    %v199 = vunpack.c.l.b16 %v119
    %v200 = vunpack.c.h.b16 %v119
    %v201 = vunpack.c.l.b16 %v120
    %v202 = vunpack.c.h.b16 %v120
    %v203 = vunpack.c.l.b16 %v121
    %v204 = vunpack.c.h.b16 %v121
    %v205 = vunpack.c.l.b16 %v122
    %v206 = vunpack.c.h.b16 %v122
    %v207 = vunpack.c.l.b16 %v123
    %v208 = vunpack.c.h.b16 %v123
    %v209 = vunpack.c.l.b16 %v124
    %v210 = vunpack.c.h.b16 %v124
    %v211 = vunpack.c.l.b16 %v125
    %v212 = vunpack.c.h.b16 %v125
    %v213 = vunpack.c.l.b16 %v126
    %v214 = vunpack.c.h.b16 %v126
    %v215 = vunpack.c.l.b16 %v127
    %v216 = vunpack.c.h.b16 %v127
    %v217 = vunpack.c.l.b16 %v128
    %v218 = vunpack.c.h.b16 %v128
    %v219 = vunpack.c.l.b16 %v129
    %v220 = vunpack.c.h.b16 %v129
    %v221 = vunpack.c.l.b16 %v130
    %v222 = vunpack.c.h.b16 %v130
    %v223 = vunpack.c.l.b16 %v131
    %v224 = vunpack.c.h.b16 %v131
    %v225 = vunpack.c.l.b16 %v132
    %v226 = vunpack.c.h.b16 %v132
    %v227 = vunpack.c.l.b16 %v133
    %v228 = vunpack.c.h.b16 %v133
    %v229 = vunpack.c.l.b16 %v134
    %v230 = vunpack.c.h.b16 %v134
    %v231 = vunpack.c.l.b16 %v135
    %v232 = vunpack.c.h.b16 %v135
    %v233 = vunpack.c.l.b16 %v136
    %v234 = vunpack.c.h.b16 %v136
    %v235 = vunpack.c.l.b16 %v137
    %v236 = vunpack.c.h.b16 %v137
    %v237 = vunpack.c.l.b16 %v138
    %v238 = vunpack.c.h.b16 %v138
    %v239 = vunpack.c.l.b16 %v139
    %v240 = vunpack.c.h.b16 %v139
    %v241 = vunpack.c.l.b16 %v140
    %v242 = vunpack.c.h.b16 %v140
    %v243 = vpack.c.b16 %v181, %v179
    %v244 = vpack.c.b16 %v182, %v180
    %v245 = vpack.c.b16 %v185, %v183
    %v246 = vpack.c.b16 %v186, %v184
    %v247 = vpack.c.b16 %v189, %v187
    %v248 = vpack.c.b16 %v190, %v188
    %v249 = vpack.c.b16 %v193, %v191
    %v250 = vpack.c.b16 %v194, %v192
    %v251 = vpack.c.b16 %v197, %v195
    %v252 = vpack.c.b16 %v198, %v196
    %v253 = vpack.c.b16 %v201, %v199
    %v254 = vpack.c.b16 %v202, %v200
    %v255 = vpack.c.b16 %v205, %v203
    %v256 = vpack.c.b16 %v206, %v204
    %v257 = vpack.c.b16 %v209, %v207
    %v258 = vpack.c.b16 %v210, %v208
    %v259 = vpack.c.b16 %v213, %v211
    %v260 = vpack.c.b16 %v214, %v212
    %v261 = vpack.c.b16 %v217, %v215
    %v262 = vpack.c.b16 %v218, %v216
    %v263 = vpack.c.b16 %v221, %v219
    %v264 = vpack.c.b16 %v222, %v220
    %v265 = vpack.c.b16 %v225, %v223
    %v266 = vpack.c.b16 %v226, %v224
    %v267 = vpack.c.b16 %v229, %v227
    %v268 = vpack.c.b16 %v230, %v228
    %v269 = vpack.c.b16 %v233, %v231
    %v270 = vpack.c.b16 %v234, %v232
    %v271 = vpack.c.b16 %v237, %v235
    %v272 = vpack.c.b16 %v238, %v236
    %v273 = vpack.c.b16 %v241, %v239
    %v274 = vpack.c.b16 %v242, %v240
    %307 = vmatpush.bf16.msra.mxu0 %v257
    %308 = vmatpush.bf16.msra.mxu0 %v255
    %309 = vmatpush.bf16.msra.mxu0 %v253
    %310 = vmatpush.bf16.msra.mxu0 %v251
    %311 = vmatpush.bf16.msra.mxu0 %v249
    %312 = vmatpush.bf16.msra.mxu0 %v247
    %313 = vmatpush.bf16.msra.mxu0 %v245
    %314 = vmatpush.bf16.msra.mxu0 %v243
    %315 = vmatmul.bf16.gmra.mxu0 %v107
    %v316 = vpop.f32.mrf.mxu0
    %v317 = vadd.f32 %v143, %v316
    %v318 = vpop.f32.mrf.mxu0
    %319 = vdwg.mxu0
    %320 = vmatpush.bf16.msra.mxu0 %v273
    %321 = vmatpush.bf16.msra.mxu0 %v271
    %322 = vmatpush.bf16.msra.mxu0 %v269
    %323 = vmatpush.bf16.msra.mxu0 %v267
    %324 = vmatpush.bf16.msra.mxu0 %v265
    %325 = vmatpush.bf16.msra.mxu0 %v263
    %326 = vmatpush.bf16.msra.mxu0 %v261
    %327 = vmatpush.bf16.msra.mxu0 %v259
    %328 = vmatmul.bf16.gmra.mxu0 %v108
    %v329 = vpop.f32.mrf.mxu0
    %v330 = vadd.f32 %v317, %v329
    %v331 = vpop.f32.mrf.mxu0
    %332 = vdwg.mxu0
    %333 = vmatpush.bf16.msra.mxu0 %v258
    %334 = vmatpush.bf16.msra.mxu0 %v256
    %335 = vmatpush.bf16.msra.mxu0 %v254
    %336 = vmatpush.bf16.msra.mxu0 %v252
    %337 = vmatpush.bf16.msra.mxu0 %v250
    %338 = vmatpush.bf16.msra.mxu0 %v248
    %339 = vmatpush.bf16.msra.mxu0 %v246
    %340 = vmatpush.bf16.msra.mxu0 %v244
    %341 = vmatmul.bf16.gmra.mxu0 %v107
    %v342 = vpop.f32.mrf.mxu0
    %v343 = vadd.f32 %v144, %v342
    %v344 = vpop.f32.mrf.mxu0
    %345 = vdwg.mxu0
    %346 = vmatpush.bf16.msra.mxu0 %v274
    %347 = vmatpush.bf16.msra.mxu0 %v272
    %348 = vmatpush.bf16.msra.mxu0 %v270
    %349 = vmatpush.bf16.msra.mxu0 %v268
    %350 = vmatpush.bf16.msra.mxu0 %v266
    %351 = vmatpush.bf16.msra.mxu0 %v264
    %352 = vmatpush.bf16.msra.mxu0 %v262
    %353 = vmatpush.bf16.msra.mxu0 %v260
    %354 = vmatmul.bf16.gmra.mxu0 %v108
    %v355 = vpop.f32.mrf.mxu0
    %v356 = vadd.f32 %v343, %v355
    %v357 = vpop.f32.mrf.mxu0
    %358 = vdwg.mxu0
    %v359 = vmax.f32 %v330, 0.0
    %v360 = vmax.f32 %v356, 0.0
    %v361 = vpack.c.bf16 %v359, %v359
    %v362 = vpack.c.bf16 %v360, %v360
    %v363 = vld [vmem:[%s5] sm:$0xf]
    %v364 = vld [vmem:[%s5 + $0x4] sm:$0xf]
    %v365 = vld [vmem:[%s5 + $0x8] sm:$0xf]
    %v366 = vld [vmem:[%s5 + $0xc] sm:$0xf]
    %v367 = vld [vmem:[%s5 + $0x10] sm:$0xf]
    %v368 = vld [vmem:[%s5 + $0x14] sm:$0xf]
    %v369 = vld [vmem:[%s5 + $0x18] sm:$0xf]
    %v370 = vld [vmem:[%s5 + $0x1c] sm:$0xf]
    %v371 = vld [vmem:[%s5 + $0x20] sm:$0xf]
    %v372 = vld [vmem:[%s5 + $0x24] sm:$0xf]
    %v373 = vld [vmem:[%s5 + $0x28] sm:$0xf]
    %v374 = vld [vmem:[%s5 + $0x2c] sm:$0xf]
    %v375 = vld [vmem:[%s5 + $0x30] sm:$0xf]
    %v376 = vld [vmem:[%s5 + $0x34] sm:$0xf]
    %v377 = vld [vmem:[%s5 + $0x38] sm:$0xf]
    %v378 = vld [vmem:[%s5 + $0x3c] sm:$0xf]
    %v379 = vld [vmem:[%s5 + $0x40] sm:$0xf]
    %v380 = vld [vmem:[%s5 + $0x44] sm:$0xf]
    %v381 = vld [vmem:[%s5 + $0x48] sm:$0xf]
    %v382 = vld [vmem:[%s5 + $0x4c] sm:$0xf]
    %v383 = vld [vmem:[%s5 + $0x50] sm:$0xf]
    %v384 = vld [vmem:[%s5 + $0x54] sm:$0xf]
    %v385 = vld [vmem:[%s5 + $0x58] sm:$0xf]
    %v386 = vld [vmem:[%s5 + $0x5c] sm:$0xf]
    %v387 = vld [vmem:[%s5 + $0x60] sm:$0xf]
    %v388 = vld [vmem:[%s5 + $0x64] sm:$0xf]
    %v389 = vld [vmem:[%s5 + $0x68] sm:$0xf]
    %v390 = vld [vmem:[%s5 + $0x6c] sm:$0xf]
    %v391 = vld [vmem:[%s5 + $0x70] sm:$0xf]
    %v392 = vld [vmem:[%s5 + $0x74] sm:$0xf]
    %v393 = vld [vmem:[%s5 + $0x78] sm:$0xf]
    %v394 = vld [vmem:[%s5 + $0x7c] sm:$0xf]
    %v395 = vld [vmem:[%s6] sm:$0x1]
    %v397 = vperm.slane %v395, 0
    %v431 = vunpack.c.l.b16 %v363
    %v432 = vunpack.c.l.b16 %v364
    %v433 = vunpack.c.l.b16 %v365
    %v434 = vunpack.c.l.b16 %v366
    %v435 = vunpack.c.l.b16 %v367
    %v436 = vunpack.c.l.b16 %v368
    %v437 = vunpack.c.l.b16 %v369
    %v438 = vunpack.c.l.b16 %v370
    %v439 = vunpack.c.l.b16 %v371
    %v440 = vunpack.c.l.b16 %v372
    %v441 = vunpack.c.l.b16 %v373
    %v442 = vunpack.c.l.b16 %v374
    %v443 = vunpack.c.l.b16 %v375
    %v444 = vunpack.c.l.b16 %v376
    %v445 = vunpack.c.l.b16 %v377
    %v446 = vunpack.c.l.b16 %v378
    %v447 = vunpack.c.l.b16 %v379
    %v448 = vunpack.c.l.b16 %v380
    %v449 = vunpack.c.l.b16 %v381
    %v450 = vunpack.c.l.b16 %v382
    %v451 = vunpack.c.l.b16 %v383
    %v452 = vunpack.c.l.b16 %v384
    %v453 = vunpack.c.l.b16 %v385
    %v454 = vunpack.c.l.b16 %v386
    %v455 = vunpack.c.l.b16 %v387
    %v456 = vunpack.c.l.b16 %v388
    %v457 = vunpack.c.l.b16 %v389
    %v458 = vunpack.c.l.b16 %v390
    %v459 = vunpack.c.l.b16 %v391
    %v460 = vunpack.c.l.b16 %v392
    %v461 = vunpack.c.l.b16 %v393
    %v462 = vunpack.c.l.b16 %v394
    %v463 = vpack.c.b16 %v432, %v431
    %v464 = vpack.c.b16 %v434, %v433
    %v465 = vpack.c.b16 %v436, %v435
    %v466 = vpack.c.b16 %v438, %v437
    %v467 = vpack.c.b16 %v440, %v439
    %v468 = vpack.c.b16 %v442, %v441
    %v469 = vpack.c.b16 %v444, %v443
    %v470 = vpack.c.b16 %v446, %v445
    %v471 = vpack.c.b16 %v448, %v447
    %v472 = vpack.c.b16 %v450, %v449
    %v473 = vpack.c.b16 %v452, %v451
    %v474 = vpack.c.b16 %v454, %v453
    %v475 = vpack.c.b16 %v456, %v455
    %v476 = vpack.c.b16 %v458, %v457
    %v477 = vpack.c.b16 %v460, %v459
    %v478 = vpack.c.b16 %v462, %v461
    %495 = vmatpush.bf16.msra.mxu0 %v470
    %496 = vmatpush.bf16.msra.mxu0 %v469
    %497 = vmatpush.bf16.msra.mxu0 %v468
    %498 = vmatpush.bf16.msra.mxu0 %v467
    %499 = vmatpush.bf16.msra.mxu0 %v466
    %500 = vmatpush.bf16.msra.mxu0 %v465
    %501 = vmatpush.bf16.msra.mxu0 %v464
    %502 = vmatpush.bf16.msra.mxu0 %v463
    %503 = vmatmul.bf16.gmra.mxu0 %v361
    %v504 = vpop.f32.mrf.mxu0
    %v505 = vadd.f32 %v397, %v504
    %v506 = vpop.f32.mrf.mxu0
    %507 = vdwg.mxu0
    %508 = vmatpush.bf16.msra.mxu0 %v478
    %509 = vmatpush.bf16.msra.mxu0 %v477
    %510 = vmatpush.bf16.msra.mxu0 %v476
    %511 = vmatpush.bf16.msra.mxu0 %v475
    %512 = vmatpush.bf16.msra.mxu0 %v474
    %513 = vmatpush.bf16.msra.mxu0 %v473
    %514 = vmatpush.bf16.msra.mxu0 %v472
    %515 = vmatpush.bf16.msra.mxu0 %v471
    %516 = vmatmul.bf16.gmra.mxu0 %v362
    %v517 = vpop.f32.mrf.mxu0
    %v518 = vadd.f32 %v505, %v517
    %v519 = vpop.f32.mrf.mxu0
    %520 = vdwg.mxu0
    %vm521 = vcmask 72704
    %522 = vst.msk [vmem:[%s7] sm:$0xff] %vm521, %v518
    // Predicated region
    $region34: #{ppo_actor_critic_forward.1} parent=1 // pred_check
      _
    $region35: #{ppo_actor_critic_forward.1} parent=1 // pred_check_branch
      %524 = sbr.rel (0) target = $region37
    $region36: #{ppo_actor_critic_forward.1} parent=1 // pred_region
      _
    $region37: #{ppo_actor_critic_forward.1} parent=1 // pred_fallthru
      _
    // Predicated region
    $region38: #{ppo_actor_critic_forward.1} parent=1 // pred_check
      _
    $region39: #{ppo_actor_critic_forward.1} parent=1 // pred_check_branch
      %526 = sbr.rel (0) target = $region41
    $region40: #{ppo_actor_critic_forward.1} parent=1 // pred_region
      _
    $region41: #{ppo_actor_critic_forward.1} parent=1 // pred_fallthru
      _
    %527 = vsyncpa [#allocation3], 1

</llo_original>
